<compile_context>
chip_gen: v7x
topology: tpu7x:2x2x1
jax: 0.10.0
libtpu: 0.0.40
codegen_flags: <defaults>
</compile_context>

<pallas_src>
import functools

import numpy as np
import jax
import jax.numpy as jnp
from jax.experimental import pallas as pl
from jax.experimental.pallas import tpu as pltpu


def make_dense_kernel(x_ref, w_ref, b_ref, m_ref, out_ref, xp_ref, col_ref,
                      *, W, KH, KW, Cin, Cin_pad):
    # x_ref  : (NB, Cin, HW)           inputs, spatial flattened on lanes
    # w_ref  : (Cout, KH*KW*Cin_pad)   im2col weights (zero cols on pad rows)
    # b_ref  : (Cout, 1)               bias
    # m_ref  : (KH*KW, NB*HW)          per-tap boundary masks tiled over images
    # out_ref: (NB, Cin+Cout, HW)      concat([x, relu(conv(x))]) on channels
    # xp_ref : (Cin_pad, NB*HW)        scratch: images packed on the lane axis
    # col_ref: (KH*KW*Cin_pad, NB*HW)  scratch: im2col matmul operand
    NB, _, HW = x_ref.shape
    L = NB * HW
    pad_h = (KH - 1) // 2
    pad_w = (KW - 1) // 2

    # Pass-through half of the channel concat: one lane-dense store.
    out_ref[:, :Cin, :] = x_ref[...]

    # Pack all images of the block onto the lane axis.  The pad channel rows
    # are kept at zero so they contribute nothing (their weight cols are 0
    # too, so no NaN/Inf risk either way).
    for nb in range(NB):
        xp_ref[:Cin, nb * HW:(nb + 1) * HW] = x_ref[nb]
    if Cin_pad > Cin:
        xp_ref[Cin:, :] = jnp.zeros((Cin_pad - Cin, L), dtype=xp_ref.dtype)

    xp = xp_ref[...]
    # im2col: one lane rotation + one masked multiply per tap over the whole
    # packed block.  shifted[p] = xp[(p + off) % L]; any lane that wraps
    # (across an image boundary or the block edge) is exactly a lane the
    # SAME-padding boundary mask zeroes.
    t = 0
    for kh in range(KH):
        for kw in range(KW):
            dh, dw = kh - pad_h, kw - pad_w
            off = dh * W + dw                 # tap offset in flattened spatial
            shifted = xp if off % L == 0 else pltpu.roll(xp, (-off) % L, 1)
            col_ref[t * Cin_pad:(t + 1) * Cin_pad, :] = (
                shifted * m_ref[t:t + 1, :])
            t += 1

    # Single wide MXU matmul for the whole block, f32 accumulation.
    acc = jnp.dot(w_ref[...], col_ref[...],
                  preferred_element_type=jnp.float32)
    acc = jnp.maximum(acc + b_ref[...].astype(jnp.float32), 0.0)
    acc = acc.astype(out_ref.dtype)

    # Conv half of the concat: slice the wide result back per image.
    for nb in range(NB):
        out_ref[nb, Cin:, :] = acc[:, nb * HW:(nb + 1) * HW]


def make_dense(x_nchw, w_hwio, bias, *, images_per_block=8):
    """Forward pass of MakeDense: concat([x, relu(conv2d(x, w) + b)], axis=1).

    x_nchw: (N, Cin, H, W), w_hwio: (KH, KW, Cin, Cout), bias: (Cout,).
    """
    N, Cin, H, W = x_nchw.shape
    KH, KW, _, Cout = w_hwio.shape
    HW = H * W
    pad_h = (KH - 1) // 2
    pad_w = (KW - 1) // 2
    dtype = x_nchw.dtype

    # Sublane-aligned channel padding for the im2col operand.
    packing = max(1, 4 // np.dtype(dtype).itemsize)   # f32 -> 1, bf16 -> 2
    sub = 8 * packing
    Cin_pad = int(pl.cdiv(Cin, sub)) * sub

    # Block the batch; pad N up instead of degrading to 1 image per step.
    NB = max(1, min(int(images_per_block), N))
    Np = int(pl.cdiv(N, NB)) * NB
    x_flat = x_nchw.reshape(N, Cin, HW)
    if Np != N:
        x_flat = jnp.pad(x_flat, ((0, Np - N), (0, 0), (0, 0)))
    grid = (Np // NB,)

    # im2col-ordered weights: column r = (kh*KW + kw)*Cin_pad + ci; columns
    # for the padded channel rows stay zero.
    w_mat = jnp.zeros((KH * KW, Cin_pad, Cout), dtype=dtype)
    w_mat = w_mat.at[:, :Cin, :].set(
        w_hwio.reshape(KH * KW, Cin, Cout).astype(dtype))
    w_mat = jnp.transpose(w_mat.reshape(KH * KW * Cin_pad, Cout), (1, 0))
    b2 = bias.reshape(Cout, 1)

    # Per-tap SAME-padding boundary masks, tiled across the NB packed images.
    hh = np.arange(H)[:, None]
    ww = np.arange(W)[None, :]
    masks = []
    for kh in range(KH):
        for kw in range(KW):
            dh, dw = kh - pad_h, kw - pad_w
            m = ((hh + dh >= 0) & (hh + dh < H) &
                 (ww + dw >= 0) & (ww + dw < W))
            masks.append(m.reshape(HW))
    mask_arr = jnp.tile(
        jnp.asarray(np.stack(masks, 0).astype(np.float32)), (1, NB)
    ).astype(dtype)

    kernel = functools.partial(make_dense_kernel, W=W, KH=KH, KW=KW,
                               Cin=Cin, Cin_pad=Cin_pad)

    out_flat = pl.pallas_call(
        kernel,
        out_shape=jax.ShapeDtypeStruct((Np, Cin + Cout, HW), dtype),
        grid=grid,
        in_specs=[
            pl.BlockSpec((NB, Cin, HW), lambda n: (n, 0, 0)),
            pl.BlockSpec((Cout, KH * KW * Cin_pad), lambda n: (0, 0)),
            pl.BlockSpec((Cout, 1), lambda n: (0, 0)),
            pl.BlockSpec((KH * KW, NB * HW), lambda n: (0, 0)),
        ],
        out_specs=pl.BlockSpec((NB, Cin + Cout, HW), lambda n: (n, 0, 0)),
        scratch_shapes=[
            pltpu.VMEM((Cin_pad, NB * HW), dtype),
            pltpu.VMEM((KH * KW * Cin_pad, NB * HW), dtype),
        ],
        compiler_params=pltpu.CompilerParams(
            # Batch axis is independent -> shard across TensorCores on v7x.
            # (For large H/W/C, tile over H with a halo and set
            #  vmem_limit_bytes to stay under v7x's 64 MiB VMEM.)
            dimension_semantics=("parallel",)),
    )(x_flat, w_mat, b2, mask_arr)

    out = out_flat.reshape(Np, Cin + Cout, H, W)
    if Np != N:
        out = out[:N]
    return out


def reference_make_dense(x_nchw, w_hwio, bias):
    """Pure-JAX reference (matches PyTorch F.conv2d + relu + cat semantics)."""
    KH, KW = w_hwio.shape[0], w_hwio.shape[1]
    pad_h, pad_w = (KH - 1) // 2, (KW - 1) // 2
    conv = jax.lax.conv_general_dilated(
        x_nchw.astype(jnp.float32),
        jnp.transpose(w_hwio, (3, 2, 0, 1)).astype(jnp.float32),  # OIHW
        window_strides=(1, 1),
        padding=[(pad_h, pad_h), (pad_w, pad_w)],
        dimension_numbers=("NCHW", "OIHW", "NCHW"),
    ) + bias.reshape(1, -1, 1, 1)
    out = jnp.maximum(conv, 0.0)
    return jnp.concatenate([x_nchw.astype(jnp.float32), out], axis=1)


if __name__ == "__main__":
    # Module config: MakeDense(in_channels=4, growth_rate=8, kernel_size=3)
    N, Cin, H, W = 2, 4, 16, 16
    growth_rate, K = 8, 3

    key = jax.random.PRNGKey(0)
    kx, kw, kb = jax.random.split(key, 3)
    x = jax.random.normal(kx, (N, Cin, H, W), dtype=jnp.float32)
    w = jax.random.normal(kw, (K, K, Cin, growth_rate), dtype=jnp.float32) * 0.1
    b = jax.random.normal(kb, (growth_rate,), dtype=jnp.float32) * 0.1

    out = jax.block_until_ready(make_dense(x, w, b))
    ref = reference_make_dense(x, w, b)

    assert out.shape == (N, Cin + growth_rate, H, W), out.shape
    assert jnp.allclose(out, ref, atol=1e-4, rtol=1e-4), (
        float(jnp.max(jnp.abs(out - ref))))

    print("KERNEL_OK")
</pallas_src>

<mosaic_0001>
module attributes {stable_mosaic.version = 11 : i64} {
  func.func @make_dense_kernel(%arg0: i32, %arg1: memref<2x4x256xf32, #tpu.memory_space<vmem>>, %arg2: memref<8x72xf32, #tpu.memory_space<vmem>>, %arg3: memref<8x1xf32, #tpu.memory_space<vmem>>, %arg4: memref<9x512xf32, #tpu.memory_space<vmem>>, %arg5: memref<2x12x256xf32, #tpu.memory_space<vmem>>, %arg6: memref<8x512xf32, #tpu.memory_space<vmem>>, %arg7: memref<72x512xf32, #tpu.memory_space<vmem>>) attributes {dimension_semantics = [#tpu.dimension_semantics<parallel>], iteration_bounds = array<i64: 1>, scalar_prefetch = 0 : i64, scratch_operands = 2 : i64, tpu.core_type = #tpu.core_type<tc>, window_params = [{transform_indices = @transform_0, window_bounds = array<i64: 2, 4, 256>}, {pipeline_mode = #tpu.pipeline_mode<synchronous>, transform_indices = @transform_1, window_bounds = array<i64: 8, 72>}, {pipeline_mode = #tpu.pipeline_mode<synchronous>, transform_indices = @transform_2, window_bounds = array<i64: 8, 1>}, {pipeline_mode = #tpu.pipeline_mode<synchronous>, transform_indices = @transform_3, window_bounds = array<i64: 9, 512>}, {transform_indices = @transform_4, window_bounds = array<i64: 2, 12, 256>}]} {
    %c0 = arith.constant 0 : index
    %c0_0 = arith.constant 0 : index
    %c0_1 = arith.constant 0 : index
    %0 = vector.load %arg1[%c0, %c0_0, %c0_1] : memref<2x4x256xf32, #tpu.memory_space<vmem>>, vector<2x4x256xf32>
    %c0_2 = arith.constant 0 : index
    %c0_3 = arith.constant 0 : index
    %c0_4 = arith.constant 0 : index
    %1 = vector.load %arg5[%c0_2, %c0_3, %c0_4] : memref<2x12x256xf32, #tpu.memory_space<vmem>>, vector<2x4x256xf32>
    tpu.vector_store %arg5[%c0_2, %c0_3, %c0_4], %0 {strides = array<i32>} : memref<2x12x256xf32, #tpu.memory_space<vmem>>, vector<2x4x256xf32>,
    %c0_5 = arith.constant 0 : index
    %c0_6 = arith.constant 0 : index
    %c0_7 = arith.constant 0 : index
    %2 = vector.load %arg1[%c0_5, %c0_6, %c0_7] : memref<2x4x256xf32, #tpu.memory_space<vmem>>, vector<1x4x256xf32>
    %3 = vector.shape_cast %2 : vector<1x4x256xf32> to vector<4x256xf32>
    %c0_8 = arith.constant 0 : index
    %c0_9 = arith.constant 0 : index
    %4 = vector.load %arg6[%c0_8, %c0_9] : memref<8x512xf32, #tpu.memory_space<vmem>>, vector<4x256xf32>
    tpu.vector_store %arg6[%c0_8, %c0_9], %3 {strides = array<i32>} : memref<8x512xf32, #tpu.memory_space<vmem>>, vector<4x256xf32>,
    %c1 = arith.constant 1 : index
    %c0_10 = arith.constant 0 : index
    %c0_11 = arith.constant 0 : index
    %5 = vector.load %arg1[%c1, %c0_10, %c0_11] : memref<2x4x256xf32, #tpu.memory_space<vmem>>, vector<1x4x256xf32>
    %6 = vector.shape_cast %5 : vector<1x4x256xf32> to vector<4x256xf32>
    %c0_12 = arith.constant 0 : index
    %c256 = arith.constant 256 : index
    %7 = vector.load %arg6[%c0_12, %c256] : memref<8x512xf32, #tpu.memory_space<vmem>>, vector<4x256xf32>
    tpu.vector_store %arg6[%c0_12, %c256], %6 {strides = array<i32>} : memref<8x512xf32, #tpu.memory_space<vmem>>, vector<4x256xf32>,
    %cst = arith.constant 0.000000e+00 : f32
    %8 = vector.broadcast %cst : f32 to vector<4x512xf32>
    %c4 = arith.constant 4 : index
    %c0_13 = arith.constant 0 : index
    %9 = vector.load %arg6[%c4, %c0_13] : memref<8x512xf32, #tpu.memory_space<vmem>>, vector<4x512xf32>
    tpu.vector_store %arg6[%c4, %c0_13], %8 {strides = array<i32>} : memref<8x512xf32, #tpu.memory_space<vmem>>, vector<4x512xf32>,
    %c0_14 = arith.constant 0 : index
    %c0_15 = arith.constant 0 : index
    %10 = vector.load %arg6[%c0_14, %c0_15] : memref<8x512xf32, #tpu.memory_space<vmem>>, vector<8x512xf32>
    %c17_i32 = arith.constant 17 : i32
    %11 = tpu.dynamic_rotate %10 by %c17_i32 dim 1 : vector<8x512xf32>, i32 -> vector<8x512xf32>
    %c0_16 = arith.constant 0 : index
    %c0_17 = arith.constant 0 : index
    %12 = vector.load %arg4[%c0_16, %c0_17] : memref<9x512xf32, #tpu.memory_space<vmem>>, vector<1x512xf32>
    %13 = vector.broadcast %12 : vector<1x512xf32> to vector<8x512xf32>
    %14 = arith.mulf %11, %13 : vector<8x512xf32>
    %c0_18 = arith.constant 0 : index
    %c0_19 = arith.constant 0 : index
    %15 = vector.load %arg7[%c0_18, %c0_19] : memref<72x512xf32, #tpu.memory_space<vmem>>, vector<8x512xf32>
    tpu.vector_store %arg7[%c0_18, %c0_19], %14 {strides = array<i32>} : memref<72x512xf32, #tpu.memory_space<vmem>>, vector<8x512xf32>,
    %c16_i32 = arith.constant 16 : i32
    %16 = tpu.dynamic_rotate %10 by %c16_i32 dim 1 : vector<8x512xf32>, i32 -> vector<8x512xf32>
    %c1_20 = arith.constant 1 : index
    %c0_21 = arith.constant 0 : index
    %17 = vector.load %arg4[%c1_20, %c0_21] : memref<9x512xf32, #tpu.memory_space<vmem>>, vector<1x512xf32>
    %18 = vector.broadcast %17 : vector<1x512xf32> to vector<8x512xf32>
    %19 = arith.mulf %16, %18 : vector<8x512xf32>
    %c8 = arith.constant 8 : index
    %c0_22 = arith.constant 0 : index
    %20 = vector.load %arg7[%c8, %c0_22] : memref<72x512xf32, #tpu.memory_space<vmem>>, vector<8x512xf32>
    tpu.vector_store %arg7[%c8, %c0_22], %19 {strides = array<i32>} : memref<72x512xf32, #tpu.memory_space<vmem>>, vector<8x512xf32>,
    %c15_i32 = arith.constant 15 : i32
    %21 = tpu.dynamic_rotate %10 by %c15_i32 dim 1 : vector<8x512xf32>, i32 -> vector<8x512xf32>
    %c2 = arith.constant 2 : index
    %c0_23 = arith.constant 0 : index
    %22 = vector.load %arg4[%c2, %c0_23] : memref<9x512xf32, #tpu.memory_space<vmem>>, vector<1x512xf32>
    %23 = vector.broadcast %22 : vector<1x512xf32> to vector<8x512xf32>
    %24 = arith.mulf %21, %23 : vector<8x512xf32>
    %c16 = arith.constant 16 : index
    %c0_24 = arith.constant 0 : index
    %25 = vector.load %arg7[%c16, %c0_24] : memref<72x512xf32, #tpu.memory_space<vmem>>, vector<8x512xf32>
    tpu.vector_store %arg7[%c16, %c0_24], %24 {strides = array<i32>} : memref<72x512xf32, #tpu.memory_space<vmem>>, vector<8x512xf32>,
    %c1_i32 = arith.constant 1 : i32
    %26 = tpu.dynamic_rotate %10 by %c1_i32 dim 1 : vector<8x512xf32>, i32 -> vector<8x512xf32>
    %c3 = arith.constant 3 : index
    %c0_25 = arith.constant 0 : index
    %27 = vector.load %arg4[%c3, %c0_25] : memref<9x512xf32, #tpu.memory_space<vmem>>, vector<1x512xf32>
    %28 = vector.broadcast %27 : vector<1x512xf32> to vector<8x512xf32>
    %29 = arith.mulf %26, %28 : vector<8x512xf32>
    %c24 = arith.constant 24 : index
    %c0_26 = arith.constant 0 : index
    %30 = vector.load %arg7[%c24, %c0_26] : memref<72x512xf32, #tpu.memory_space<vmem>>, vector<8x512xf32>
    tpu.vector_store %arg7[%c24, %c0_26], %29 {strides = array<i32>} : memref<72x512xf32, #tpu.memory_space<vmem>>, vector<8x512xf32>,
    %c4_27 = arith.constant 4 : index
    %c0_28 = arith.constant 0 : index
    %31 = vector.load %arg4[%c4_27, %c0_28] : memref<9x512xf32, #tpu.memory_space<vmem>>, vector<1x512xf32>
    %32 = vector.broadcast %31 : vector<1x512xf32> to vector<8x512xf32>
    %33 = arith.mulf %10, %32 : vector<8x512xf32>
    %c32 = arith.constant 32 : index
    %c0_29 = arith.constant 0 : index
    %34 = vector.load %arg7[%c32, %c0_29] : memref<72x512xf32, #tpu.memory_space<vmem>>, vector<8x512xf32>
    tpu.vector_store %arg7[%c32, %c0_29], %33 {strides = array<i32>} : memref<72x512xf32, #tpu.memory_space<vmem>>, vector<8x512xf32>,
    %c511_i32 = arith.constant 511 : i32
    %35 = tpu.dynamic_rotate %10 by %c511_i32 dim 1 : vector<8x512xf32>, i32 -> vector<8x512xf32>
    %c5 = arith.constant 5 : index
    %c0_30 = arith.constant 0 : index
    %36 = vector.load %arg4[%c5, %c0_30] : memref<9x512xf32, #tpu.memory_space<vmem>>, vector<1x512xf32>
    %37 = vector.broadcast %36 : vector<1x512xf32> to vector<8x512xf32>
    %38 = arith.mulf %35, %37 : vector<8x512xf32>
    %c40 = arith.constant 40 : index
    %c0_31 = arith.constant 0 : index
    %39 = vector.load %arg7[%c40, %c0_31] : memref<72x512xf32, #tpu.memory_space<vmem>>, vector<8x512xf32>
    tpu.vector_store %arg7[%c40, %c0_31], %38 {strides = array<i32>} : memref<72x512xf32, #tpu.memory_space<vmem>>, vector<8x512xf32>,
    %c497_i32 = arith.constant 497 : i32
    %40 = tpu.dynamic_rotate %10 by %c497_i32 dim 1 : vector<8x512xf32>, i32 -> vector<8x512xf32>
    %c6 = arith.constant 6 : index
    %c0_32 = arith.constant 0 : index
    %41 = vector.load %arg4[%c6, %c0_32] : memref<9x512xf32, #tpu.memory_space<vmem>>, vector<1x512xf32>
    %42 = vector.broadcast %41 : vector<1x512xf32> to vector<8x512xf32>
    %43 = arith.mulf %40, %42 : vector<8x512xf32>
    %c48 = arith.constant 48 : index
    %c0_33 = arith.constant 0 : index
    %44 = vector.load %arg7[%c48, %c0_33] : memref<72x512xf32, #tpu.memory_space<vmem>>, vector<8x512xf32>
    tpu.vector_store %arg7[%c48, %c0_33], %43 {strides = array<i32>} : memref<72x512xf32, #tpu.memory_space<vmem>>, vector<8x512xf32>,
    %c496_i32 = arith.constant 496 : i32
    %45 = tpu.dynamic_rotate %10 by %c496_i32 dim 1 : vector<8x512xf32>, i32 -> vector<8x512xf32>
    %c7 = arith.constant 7 : index
    %c0_34 = arith.constant 0 : index
    %46 = vector.load %arg4[%c7, %c0_34] : memref<9x512xf32, #tpu.memory_space<vmem>>, vector<1x512xf32>
    %47 = vector.broadcast %46 : vector<1x512xf32> to vector<8x512xf32>
    %48 = arith.mulf %45, %47 : vector<8x512xf32>
    %c56 = arith.constant 56 : index
    %c0_35 = arith.constant 0 : index
    %49 = vector.load %arg7[%c56, %c0_35] : memref<72x512xf32, #tpu.memory_space<vmem>>, vector<8x512xf32>
    tpu.vector_store %arg7[%c56, %c0_35], %48 {strides = array<i32>} : memref<72x512xf32, #tpu.memory_space<vmem>>, vector<8x512xf32>,
    %c495_i32 = arith.constant 495 : i32
    %50 = tpu.dynamic_rotate %10 by %c495_i32 dim 1 : vector<8x512xf32>, i32 -> vector<8x512xf32>
    %c8_36 = arith.constant 8 : index
    %c0_37 = arith.constant 0 : index
    %51 = vector.load %arg4[%c8_36, %c0_37] : memref<9x512xf32, #tpu.memory_space<vmem>>, vector<1x512xf32>
    %52 = vector.broadcast %51 : vector<1x512xf32> to vector<8x512xf32>
    %53 = arith.mulf %50, %52 : vector<8x512xf32>
    %c64 = arith.constant 64 : index
    %c0_38 = arith.constant 0 : index
    %54 = vector.load %arg7[%c64, %c0_38] : memref<72x512xf32, #tpu.memory_space<vmem>>, vector<8x512xf32>
    tpu.vector_store %arg7[%c64, %c0_38], %53 {strides = array<i32>} : memref<72x512xf32, #tpu.memory_space<vmem>>, vector<8x512xf32>,
    %c0_39 = arith.constant 0 : index
    %c0_40 = arith.constant 0 : index
    %55 = vector.load %arg2[%c0_39, %c0_40] : memref<8x72xf32, #tpu.memory_space<vmem>>, vector<8x72xf32>
    %c0_41 = arith.constant 0 : index
    %c0_42 = arith.constant 0 : index
    %56 = vector.load %arg7[%c0_41, %c0_42] : memref<72x512xf32, #tpu.memory_space<vmem>>, vector<72x512xf32>
    %cst_43 = arith.constant dense<0.000000e+00> : vector<8x512xf32>
    %57 = tpu.matmul %55, %56, %cst_43 {dimension_numbers = #tpu.dot_dimension_numbers<[1], [0], [0], [1], [0, 0, 1, 1], [], []>} : vector<8x72xf32>, vector<72x512xf32>, vector<8x512xf32> -> vector<8x512xf32>
    %c0_44 = arith.constant 0 : index
    %c0_45 = arith.constant 0 : index
    %58 = vector.load %arg3[%c0_44, %c0_45] : memref<8x1xf32, #tpu.memory_space<vmem>>, vector<8x1xf32>
    %59 = vector.broadcast %58 : vector<8x1xf32> to vector<8x512xf32>
    %60 = arith.addf %57, %59 : vector<8x512xf32>
    %cst_46 = arith.constant 0.000000e+00 : f32
    %61 = vector.broadcast %cst_46 : f32 to vector<8x512xf32>
    %62 = arith.maximumf %60, %61 : vector<8x512xf32>
    %63 = vector.extract_strided_slice %62 {offsets = [0, 0], sizes = [8, 256], strides = [1, 1]} : vector<8x512xf32> to vector<8x256xf32>
    %c0_47 = arith.constant 0 : index
    %c4_48 = arith.constant 4 : index
    %c0_49 = arith.constant 0 : index
    %64 = vector.load %arg5[%c0_47, %c4_48, %c0_49] : memref<2x12x256xf32, #tpu.memory_space<vmem>>, vector<1x8x256xf32>
    %65 = vector.shape_cast %64 : vector<1x8x256xf32> to vector<8x256xf32>
    %66 = vector.shape_cast %63 : vector<8x256xf32> to vector<1x8x256xf32>
    tpu.vector_store %arg5[%c0_47, %c4_48, %c0_49], %66 {strides = array<i32>} : memref<2x12x256xf32, #tpu.memory_space<vmem>>, vector<1x8x256xf32>,
    %67 = vector.extract_strided_slice %62 {offsets = [0, 256], sizes = [8, 256], strides = [1, 1]} : vector<8x512xf32> to vector<8x256xf32>
    %c1_50 = arith.constant 1 : index
    %c4_51 = arith.constant 4 : index
    %c0_52 = arith.constant 0 : index
    %68 = vector.load %arg5[%c1_50, %c4_51, %c0_52] : memref<2x12x256xf32, #tpu.memory_space<vmem>>, vector<1x8x256xf32>
    %69 = vector.shape_cast %68 : vector<1x8x256xf32> to vector<8x256xf32>
    %70 = vector.shape_cast %67 : vector<8x256xf32> to vector<1x8x256xf32>
    tpu.vector_store %arg5[%c1_50, %c4_51, %c0_52], %70 {strides = array<i32>} : memref<2x12x256xf32, #tpu.memory_space<vmem>>, vector<1x8x256xf32>,
    return
  }
  func.func @transform_0(%arg0: i32) -> (i32, i32, i32) {
    %c0_i32 = arith.constant 0 : i32
    %c0_i32_0 = arith.constant 0 : i32
    %c0_i32_1 = arith.constant 0 : i32
    return %arg0, %c0_i32, %c0_i32_0 : i32, i32, i32
  }
  func.func @transform_1(%arg0: i32) -> (i32, i32) {
    %c0_i32 = arith.constant 0 : i32
    %c0_i32_0 = arith.constant 0 : i32
    %c0_i32_1 = arith.constant 0 : i32
    return %c0_i32, %c0_i32_0 : i32, i32
  }
  func.func @transform_2(%arg0: i32) -> (i32, i32) {
    %c0_i32 = arith.constant 0 : i32
    %c0_i32_0 = arith.constant 0 : i32
    %c0_i32_1 = arith.constant 0 : i32
    return %c0_i32, %c0_i32_0 : i32, i32
  }
  func.func @transform_3(%arg0: i32) -> (i32, i32) {
    %c0_i32 = arith.constant 0 : i32
    %c0_i32_0 = arith.constant 0 : i32
    %c0_i32_1 = arith.constant 0 : i32
    return %c0_i32, %c0_i32_0 : i32, i32
  }
  func.func @transform_4(%arg0: i32) -> (i32, i32, i32) {
    %c0_i32 = arith.constant 0 : i32
    %c0_i32_0 = arith.constant 0 : i32
    %c0_i32_1 = arith.constant 0 : i32
    return %arg0, %c0_i32, %c0_i32_0 : i32, i32, i32
  }
}

</mosaic_0001>

<llo_original>
// kernel: tpu_custom_call.1
$region0: #{tpu_custom_call.1}
  #allocation0 [shape = 'u32[]', space=smem, size = 0x4, offset = 0x4, fixed_abs, tag = 'smem constant byte address 0x4 - core index']
  #allocation1 [shape = 'u32[144,128]{1,0:T(1,128)}', space=vmem, size = 0x12000, scoped, tag = 'internal scratch']
  #allocation2 [shape = 'f32[8,512]{1,0:T(8,128)}', space=vmem, size = 0x4000, scoped, tag = 'scratch operand']
  #allocation3 [shape = 'f32[72,512]{1,0:T(8,128)}', space=vmem, size = 0x24000, scoped, tag = 'scratch operand']
  %s0 = inlined_call_operand.hbm [shape: f32[2,4,256], index: 0, kind: input, shape index: {}]
  %s1 = inlined_call_operand.vmem [shape: f32[8,72], index: 1, kind: input, shape index: {}]
  %s2 = inlined_call_operand.vmem [shape: f32[8,1], index: 2, kind: input, shape index: {}]
  %s3 = inlined_call_operand.hbm [shape: f32[9,512], index: 3, kind: input, shape index: {}]
  %s4 = inlined_call_operand.vmem [shape: f32[2,12,256], index: 4, kind: output, shape index: {}]
  %s5 = sld [smem:[#allocation0]]
  $region34: #{tpu_custom_call.1} parent=0
    _
  %s7 = ssub.s32 1, %s5
  %s8 = scalar_select 0, %s7, %s5
  $region1: #{tpu_custom_call.1} parent=0
    #allocation4 [shape = 'u8[8192]{0}', space=vmem, size = 0x2000, scoped, tag = 'input window, operand 0, single buffered']
    #allocation5 [shape = 's32[1]{0}', space=sflag, size = 0x4, scoped, tag = 'scoped memory for tpu_custom_call.1']
    #allocation6 [shape = 'u8[32768]{0}', space=vmem, size = 0x8000, scoped, tag = 'input window, operand 3, single buffered']
    #allocation7 [shape = 's32[1]{0}', space=sflag, size = 0x4, scoped, tag = 'scoped memory for tpu_custom_call.1']
    %9 = vsyncpa [#allocation5], 0
    %10 = vsyncpa [#allocation7], 0
    // Predicated region
    $region2: #{tpu_custom_call.1} parent=1 // pred_check
      _
    $region3: #{tpu_custom_call.1} parent=1 // pred_check_branch
      %12 = sbr.rel (0) target = $region5
    $region4: #{tpu_custom_call.1} parent=1 // pred_region
      %s14 = ssub.s32 256, 256
      %15 = vsyncadd [#allocation5], %s14
      %s16 = sshll.u32 [#allocation4], 4
      %s17 = int_to_ptr.vmem [resolvable:$true] %s16
      %22 = dma.hbm_to_vmem [thread:$0]  %s0, 256, %s17, [#allocation5], 128, 128, 8
    $region5: #{tpu_custom_call.1} parent=1 // pred_fallthru
      _
    // Predicated region
    $region6: #{tpu_custom_call.1} parent=1 // pred_check
      _
    $region7: #{tpu_custom_call.1} parent=1 // pred_check_branch
      %24 = sbr.rel (0) target = $region9
    $region8: #{tpu_custom_call.1} parent=1 // pred_region
      _
    $region9: #{tpu_custom_call.1} parent=1 // pred_fallthru
      _
    // Predicated region
    $region10: #{tpu_custom_call.1} parent=1 // pred_check
      _
    $region11: #{tpu_custom_call.1} parent=1 // pred_check_branch
      %26 = sbr.rel (0) target = $region13
    $region12: #{tpu_custom_call.1} parent=1 // pred_region
      _
    $region13: #{tpu_custom_call.1} parent=1 // pred_fallthru
      _
    // Predicated region
    $region14: #{tpu_custom_call.1} parent=1 // pred_check
      _
    $region15: #{tpu_custom_call.1} parent=1 // pred_check_branch
      %28 = sbr.rel (0) target = $region17
    $region16: #{tpu_custom_call.1} parent=1 // pred_region
      %s30 = ssub.s32 1024, 1024
      %31 = vsyncadd [#allocation7], %s30
      %s32 = sshll.u32 [#allocation6], 4
      %s33 = int_to_ptr.vmem [resolvable:$true] %s32
      %38 = dma.hbm_to_vmem [thread:$0]  %s3, 1024, %s33, [#allocation7], 512, 512, 32
    $region17: #{tpu_custom_call.1} parent=1 // pred_fallthru
      _
    // Predicated region
    $region18: #{tpu_custom_call.1} parent=1 // pred_check
      _
    $region19: #{tpu_custom_call.1} parent=1 // pred_check_branch
      %40 = sbr.rel (0) target = $region21
    $region20: #{tpu_custom_call.1} parent=1 // pred_region
      %41 = dma.done [#allocation5], 256
    $region21: #{tpu_custom_call.1} parent=1 // pred_fallthru
      _
    // Predicated region
    $region22: #{tpu_custom_call.1} parent=1 // pred_check
      _
    $region23: #{tpu_custom_call.1} parent=1 // pred_check_branch
      %43 = sbr.rel (0) target = $region25
    $region24: #{tpu_custom_call.1} parent=1 // pred_region
      %44 = dma.done [#allocation7], 1024
    $region25: #{tpu_custom_call.1} parent=1 // pred_fallthru
      _
    %v45 = vld [vmem:[#allocation4] sm:$0xff]
    %v46 = vld [vmem:[#allocation4 + $0x8] sm:$0xff]
    %v49 = vcombine.high %v45, %v45
    %v50 = vcombine.high %v46, %v46
    %53 = vst [vmem:[%s4] sm:$0xf] %v45
    %54 = vst [vmem:[%s4 + $0x8] sm:$0xf] %v49
    %55 = vst [vmem:[%s4 + $0x20] sm:$0xf] %v46
    %56 = vst [vmem:[%s4 + $0x28] sm:$0xf] %v50
    %v57 = vld [vmem:[#allocation4] sm:$0xff]
    %v59 = vcombine.high %v57, %v57
    %61 = vst [vmem:[#allocation2] sm:$0xf] %v57
    %62 = vst [vmem:[#allocation2 + $0x8] sm:$0xf] %v59
    %s63 = scalar_lea.vmem [#allocation4], 8
    %v64 = vld [vmem:[%s63] sm:$0xff]
    %v66 = vcombine.high %v64, %v64
    %68 = vst [vmem:[#allocation2 + $0x10] sm:$0xf] %v64
    %69 = vst [vmem:[#allocation2 + $0x18] sm:$0xf] %v66
    %70 = vst [vmem:[#allocation2] sm:$0xf0] 0.0
    %71 = vst [vmem:[#allocation2 + $0x8] sm:$0xf0] 0.0
    %72 = vst [vmem:[#allocation2 + $0x10] sm:$0xf0] 0.0
    %73 = vst [vmem:[#allocation2 + $0x18] sm:$0xf0] 0.0
    %v74 = vld [vmem:[#allocation2] sm:$0xff]
    %v75 = vld [vmem:[#allocation2 + $0x8] sm:$0xff]
    %v76 = vld [vmem:[#allocation2 + $0x10] sm:$0xff]
    %v77 = vld [vmem:[#allocation2 + $0x18] sm:$0xff]
    %78 = vrot.lane.b32.xlu0 %v74, 17
    %v79 = vpop.permute.xlu0 %78
    %80 = vrot.lane.b32.xlu0 %v75, 17
    %v81 = vpop.permute.xlu0 %80
    %82 = vrot.lane.b32.xlu0 %v76, 17
    %v83 = vpop.permute.xlu0 %82
    %84 = vrot.lane.b32.xlu0 %v77, 17
    %v85 = vpop.permute.xlu0 %84
    %v86 = vlaneseq
    %v87 = vand.u32 %v86, 127
    %vm88 = vcmp.lt.s32.totalorder %v87, 17
    %v89 = vsel %vm88, %v83, %v85
    %v90 = vsel %vm88, %v81, %v83
    %v91 = vsel %vm88, %v79, %v81
    %v92 = vsel %vm88, %v85, %v79
    %v93 = vld [vmem:[#allocation6] ss:$8 sm:$0xf]
    %v95 = vlaneseq
    %v96 = vshrl.u32 %v95, 7
    %v97 = vsub.s32 0, %v96
    %v98 = vrot.slane %v93, %v97
    %v99 = vlaneseq
    %v100 = vshrl.u32 %v99, 7
    %v101 = vsub.s32 1, %v100
    %v102 = vrot.slane %v93, %v101
    %v103 = vlaneseq
    %v104 = vshrl.u32 %v103, 7
    %v105 = vsub.s32 2, %v104
    %v106 = vrot.slane %v93, %v105
    %v107 = vlaneseq
    %v108 = vshrl.u32 %v107, 7
    %v109 = vsub.s32 3, %v108
    %v110 = vrot.slane %v93, %v109
    %v115 = vmul.f32 %v92, %v98
    %v116 = vmul.f32 %v91, %v102
    %v117 = vmul.f32 %v90, %v106
    %v118 = vmul.f32 %v89, %v110
    %119 = vst [vmem:[#allocation3] sm:$0xff] %v115
    %120 = vst [vmem:[#allocation3 + $0x8] sm:$0xff] %v116
    %121 = vst [vmem:[#allocation3 + $0x10] sm:$0xff] %v117
    %122 = vst [vmem:[#allocation3 + $0x18] sm:$0xff] %v118
    %123 = vrot.lane.b32.xlu0 %v74, 16
    %v124 = vpop.permute.xlu0 %123
    %125 = vrot.lane.b32.xlu0 %v75, 16
    %v126 = vpop.permute.xlu0 %125
    %127 = vrot.lane.b32.xlu0 %v76, 16
    %v128 = vpop.permute.xlu0 %127
    %129 = vrot.lane.b32.xlu0 %v77, 16
    %v130 = vpop.permute.xlu0 %129
    %vm131 = vcmp.lt.s32.totalorder %v87, 16
    %v132 = vsel %vm131, %v128, %v130
    %v133 = vsel %vm131, %v126, %v128
    %v134 = vsel %vm131, %v124, %v126
    %v135 = vsel %vm131, %v130, %v124
    %s136 = scalar_lea.vmem [#allocation6], 1
    %v137 = vld [vmem:[%s136] ss:$8 sm:$0xf]
    %v139 = vlaneseq
    %v140 = vshrl.u32 %v139, 7
    %v141 = vsub.s32 0, %v140
    %v142 = vrot.slane %v137, %v141
    %v143 = vlaneseq
    %v144 = vshrl.u32 %v143, 7
    %v145 = vsub.s32 1, %v144
    %v146 = vrot.slane %v137, %v145
    %v147 = vlaneseq
    %v148 = vshrl.u32 %v147, 7
    %v149 = vsub.s32 2, %v148
    %v150 = vrot.slane %v137, %v149
    %v151 = vlaneseq
    %v152 = vshrl.u32 %v151, 7
    %v153 = vsub.s32 3, %v152
    %v154 = vrot.slane %v137, %v153
    %v159 = vmul.f32 %v135, %v142
    %v160 = vmul.f32 %v134, %v146
    %v161 = vmul.f32 %v133, %v150
    %v162 = vmul.f32 %v132, %v154
    %163 = vst [vmem:[#allocation3 + $0x20] sm:$0xff] %v159
    %164 = vst [vmem:[#allocation3 + $0x28] sm:$0xff] %v160
    %165 = vst [vmem:[#allocation3 + $0x30] sm:$0xff] %v161
    %166 = vst [vmem:[#allocation3 + $0x38] sm:$0xff] %v162
    %167 = vrot.lane.b32.xlu0 %v74, 15
    %v168 = vpop.permute.xlu0 %167
    %169 = vrot.lane.b32.xlu0 %v75, 15
    %v170 = vpop.permute.xlu0 %169
    %171 = vrot.lane.b32.xlu0 %v76, 15
    %v172 = vpop.permute.xlu0 %171
    %173 = vrot.lane.b32.xlu0 %v77, 15
    %v174 = vpop.permute.xlu0 %173
    %vm175 = vcmp.lt.s32.totalorder %v87, 15
    %v176 = vsel %vm175, %v172, %v174
    %v177 = vsel %vm175, %v170, %v172
    %v178 = vsel %vm175, %v168, %v170
    %v179 = vsel %vm175, %v174, %v168
    %s180 = scalar_lea.vmem [#allocation6], 2
    %v181 = vld [vmem:[%s180] ss:$8 sm:$0xf]
    %v183 = vlaneseq
    %v184 = vshrl.u32 %v183, 7
    %v185 = vsub.s32 0, %v184
    %v186 = vrot.slane %v181, %v185
    %v187 = vlaneseq
    %v188 = vshrl.u32 %v187, 7
    %v189 = vsub.s32 1, %v188
    %v190 = vrot.slane %v181, %v189
    %v191 = vlaneseq
    %v192 = vshrl.u32 %v191, 7
    %v193 = vsub.s32 2, %v192
    %v194 = vrot.slane %v181, %v193
    %v195 = vlaneseq
    %v196 = vshrl.u32 %v195, 7
    %v197 = vsub.s32 3, %v196
    %v198 = vrot.slane %v181, %v197
    %v203 = vmul.f32 %v179, %v186
    %v204 = vmul.f32 %v178, %v190
    %v205 = vmul.f32 %v177, %v194
    %v206 = vmul.f32 %v176, %v198
    %207 = vst [vmem:[#allocation3 + $0x40] sm:$0xff] %v203
    %208 = vst [vmem:[#allocation3 + $0x48] sm:$0xff] %v204
    %209 = vst [vmem:[#allocation3 + $0x50] sm:$0xff] %v205
    %210 = vst [vmem:[#allocation3 + $0x58] sm:$0xff] %v206
    %211 = vrot.lane.b32.xlu0 %v74, 1
    %v212 = vpop.permute.xlu0 %211
    %213 = vrot.lane.b32.xlu0 %v75, 1
    %v214 = vpop.permute.xlu0 %213
    %215 = vrot.lane.b32.xlu0 %v76, 1
    %v216 = vpop.permute.xlu0 %215
    %217 = vrot.lane.b32.xlu0 %v77, 1
    %v218 = vpop.permute.xlu0 %217
    %vm219 = vcmp.lt.s32.totalorder %v87, 1
    %v220 = vsel %vm219, %v216, %v218
    %v221 = vsel %vm219, %v214, %v216
    %v222 = vsel %vm219, %v212, %v214
    %v223 = vsel %vm219, %v218, %v212
    %s224 = scalar_lea.vmem [#allocation6], 3
    %v225 = vld [vmem:[%s224] ss:$8 sm:$0xf]
    %v227 = vlaneseq
    %v228 = vshrl.u32 %v227, 7
    %v229 = vsub.s32 0, %v228
    %v230 = vrot.slane %v225, %v229
    %v231 = vlaneseq
    %v232 = vshrl.u32 %v231, 7
    %v233 = vsub.s32 1, %v232
    %v234 = vrot.slane %v225, %v233
    %v235 = vlaneseq
    %v236 = vshrl.u32 %v235, 7
    %v237 = vsub.s32 2, %v236
    %v238 = vrot.slane %v225, %v237
    %v239 = vlaneseq
    %v240 = vshrl.u32 %v239, 7
    %v241 = vsub.s32 3, %v240
    %v242 = vrot.slane %v225, %v241
    %v247 = vmul.f32 %v223, %v230
    %v248 = vmul.f32 %v222, %v234
    %v249 = vmul.f32 %v221, %v238
    %v250 = vmul.f32 %v220, %v242
    %251 = vst [vmem:[#allocation3 + $0x60] sm:$0xff] %v247
    %252 = vst [vmem:[#allocation3 + $0x68] sm:$0xff] %v248
    %253 = vst [vmem:[#allocation3 + $0x70] sm:$0xff] %v249
    %254 = vst [vmem:[#allocation3 + $0x78] sm:$0xff] %v250
    %s255 = scalar_lea.vmem [#allocation6], 4
    %v256 = vld [vmem:[%s255] ss:$8 sm:$0xf]
    %v258 = vlaneseq
    %v259 = vshrl.u32 %v258, 7
    %v260 = vsub.s32 0, %v259
    %v261 = vrot.slane %v256, %v260
    %v262 = vlaneseq
    %v263 = vshrl.u32 %v262, 7
    %v264 = vsub.s32 1, %v263
    %v265 = vrot.slane %v256, %v264
    %v266 = vlaneseq
    %v267 = vshrl.u32 %v266, 7
    %v268 = vsub.s32 2, %v267
    %v269 = vrot.slane %v256, %v268
    %v270 = vlaneseq
    %v271 = vshrl.u32 %v270, 7
    %v272 = vsub.s32 3, %v271
    %v273 = vrot.slane %v256, %v272
    %v278 = vmul.f32 %v74, %v261
    %v279 = vmul.f32 %v75, %v265
    %v280 = vmul.f32 %v76, %v269
    %v281 = vmul.f32 %v77, %v273
    %282 = vst [vmem:[#allocation3 + $0x80] sm:$0xff] %v278
    %283 = vst [vmem:[#allocation3 + $0x88] sm:$0xff] %v279
    %284 = vst [vmem:[#allocation3 + $0x90] sm:$0xff] %v280
    %285 = vst [vmem:[#allocation3 + $0x98] sm:$0xff] %v281
    %286 = vrot.lane.b32.xlu0 %v74, 127
    %v287 = vpop.permute.xlu0 %286
    %288 = vrot.lane.b32.xlu0 %v75, 127
    %v289 = vpop.permute.xlu0 %288
    %290 = vrot.lane.b32.xlu0 %v76, 127
    %v291 = vpop.permute.xlu0 %290
    %292 = vrot.lane.b32.xlu0 %v77, 127
    %v293 = vpop.permute.xlu0 %292
    %vm294 = vcmp.lt.s32.totalorder %v87, 127
    %v295 = vsel %vm294, %v291, %v293
    %v296 = vsel %vm294, %v289, %v291
    %v297 = vsel %vm294, %v287, %v289
    %v298 = vsel %vm294, %v293, %v287
    %s299 = scalar_lea.vmem [#allocation6], 5
    %v300 = vld [vmem:[%s299] ss:$8 sm:$0xf]
    %v302 = vlaneseq
    %v303 = vshrl.u32 %v302, 7
    %v304 = vsub.s32 0, %v303
    %v305 = vrot.slane %v300, %v304
    %v306 = vlaneseq
    %v307 = vshrl.u32 %v306, 7
    %v308 = vsub.s32 1, %v307
    %v309 = vrot.slane %v300, %v308
    %v310 = vlaneseq
    %v311 = vshrl.u32 %v310, 7
    %v312 = vsub.s32 2, %v311
    %v313 = vrot.slane %v300, %v312
    %v314 = vlaneseq
    %v315 = vshrl.u32 %v314, 7
    %v316 = vsub.s32 3, %v315
    %v317 = vrot.slane %v300, %v316
    %v322 = vmul.f32 %v297, %v305
    %v323 = vmul.f32 %v296, %v309
    %v324 = vmul.f32 %v295, %v313
    %v325 = vmul.f32 %v298, %v317
    %326 = vst [vmem:[#allocation3 + $0xa0] sm:$0xff] %v322
    %327 = vst [vmem:[#allocation3 + $0xa8] sm:$0xff] %v323
    %328 = vst [vmem:[#allocation3 + $0xb0] sm:$0xff] %v324
    %329 = vst [vmem:[#allocation3 + $0xb8] sm:$0xff] %v325
    %330 = vrot.lane.b32.xlu0 %v74, 113
    %v331 = vpop.permute.xlu0 %330
    %332 = vrot.lane.b32.xlu0 %v75, 113
    %v333 = vpop.permute.xlu0 %332
    %334 = vrot.lane.b32.xlu0 %v76, 113
    %v335 = vpop.permute.xlu0 %334
    %336 = vrot.lane.b32.xlu0 %v77, 113
    %v337 = vpop.permute.xlu0 %336
    %vm338 = vcmp.lt.s32.totalorder %v87, 113
    %v339 = vsel %vm338, %v335, %v337
    %v340 = vsel %vm338, %v333, %v335
    %v341 = vsel %vm338, %v331, %v333
    %v342 = vsel %vm338, %v337, %v331
    %s343 = scalar_lea.vmem [#allocation6], 6
    %v344 = vld [vmem:[%s343] ss:$8 sm:$0xf]
    %v346 = vlaneseq
    %v347 = vshrl.u32 %v346, 7
    %v348 = vsub.s32 0, %v347
    %v349 = vrot.slane %v344, %v348
    %v350 = vlaneseq
    %v351 = vshrl.u32 %v350, 7
    %v352 = vsub.s32 1, %v351
    %v353 = vrot.slane %v344, %v352
    %v354 = vlaneseq
    %v355 = vshrl.u32 %v354, 7
    %v356 = vsub.s32 2, %v355
    %v357 = vrot.slane %v344, %v356
    %v358 = vlaneseq
    %v359 = vshrl.u32 %v358, 7
    %v360 = vsub.s32 3, %v359
    %v361 = vrot.slane %v344, %v360
    %v366 = vmul.f32 %v341, %v349
    %v367 = vmul.f32 %v340, %v353
    %v368 = vmul.f32 %v339, %v357
    %v369 = vmul.f32 %v342, %v361
    %370 = vst [vmem:[#allocation3 + $0xc0] sm:$0xff] %v366
    %371 = vst [vmem:[#allocation3 + $0xc8] sm:$0xff] %v367
    %372 = vst [vmem:[#allocation3 + $0xd0] sm:$0xff] %v368
    %373 = vst [vmem:[#allocation3 + $0xd8] sm:$0xff] %v369
    %374 = vrot.lane.b32.xlu0 %v74, 112
    %v375 = vpop.permute.xlu0 %374
    %376 = vrot.lane.b32.xlu0 %v75, 112
    %v377 = vpop.permute.xlu0 %376
    %378 = vrot.lane.b32.xlu0 %v76, 112
    %v379 = vpop.permute.xlu0 %378
    %380 = vrot.lane.b32.xlu0 %v77, 112
    %v381 = vpop.permute.xlu0 %380
    %vm382 = vcmp.lt.s32.totalorder %v87, 112
    %v383 = vsel %vm382, %v379, %v381
    %v384 = vsel %vm382, %v377, %v379
    %v385 = vsel %vm382, %v375, %v377
    %v386 = vsel %vm382, %v381, %v375
    %s387 = scalar_lea.vmem [#allocation6], 7
    %v388 = vld [vmem:[%s387] ss:$8 sm:$0xf]
    %v390 = vlaneseq
    %v391 = vshrl.u32 %v390, 7
    %v392 = vsub.s32 0, %v391
    %v393 = vrot.slane %v388, %v392
    %v394 = vlaneseq
    %v395 = vshrl.u32 %v394, 7
    %v396 = vsub.s32 1, %v395
    %v397 = vrot.slane %v388, %v396
    %v398 = vlaneseq
    %v399 = vshrl.u32 %v398, 7
    %v400 = vsub.s32 2, %v399
    %v401 = vrot.slane %v388, %v400
    %v402 = vlaneseq
    %v403 = vshrl.u32 %v402, 7
    %v404 = vsub.s32 3, %v403
    %v405 = vrot.slane %v388, %v404
    %v410 = vmul.f32 %v385, %v393
    %v411 = vmul.f32 %v384, %v397
    %v412 = vmul.f32 %v383, %v401
    %v413 = vmul.f32 %v386, %v405
    %414 = vst [vmem:[#allocation3 + $0xe0] sm:$0xff] %v410
    %415 = vst [vmem:[#allocation3 + $0xe8] sm:$0xff] %v411
    %416 = vst [vmem:[#allocation3 + $0xf0] sm:$0xff] %v412
    %417 = vst [vmem:[#allocation3 + $0xf8] sm:$0xff] %v413
    %418 = vrot.lane.b32.xlu0 %v74, 111
    %v419 = vpop.permute.xlu0 %418
    %420 = vrot.lane.b32.xlu0 %v75, 111
    %v421 = vpop.permute.xlu0 %420
    %422 = vrot.lane.b32.xlu0 %v76, 111
    %v423 = vpop.permute.xlu0 %422
    %424 = vrot.lane.b32.xlu0 %v77, 111
    %v425 = vpop.permute.xlu0 %424
    %vm426 = vcmp.lt.s32.totalorder %v87, 111
    %v427 = vsel %vm426, %v423, %v425
    %v428 = vsel %vm426, %v421, %v423
    %v429 = vsel %vm426, %v419, %v421
    %v430 = vsel %vm426, %v425, %v419
    %s431 = scalar_lea.vmem [#allocation6], 32
    %v432 = vld [vmem:[%s431] ss:$8 sm:$0xf]
    %v434 = vlaneseq
    %v435 = vshrl.u32 %v434, 7
    %v436 = vsub.s32 0, %v435
    %v437 = vrot.slane %v432, %v436
    %v438 = vlaneseq
    %v439 = vshrl.u32 %v438, 7
    %v440 = vsub.s32 1, %v439
    %v441 = vrot.slane %v432, %v440
    %v442 = vlaneseq
    %v443 = vshrl.u32 %v442, 7
    %v444 = vsub.s32 2, %v443
    %v445 = vrot.slane %v432, %v444
    %v446 = vlaneseq
    %v447 = vshrl.u32 %v446, 7
    %v448 = vsub.s32 3, %v447
    %v449 = vrot.slane %v432, %v448
    %v454 = vmul.f32 %v429, %v437
    %v455 = vmul.f32 %v428, %v441
    %v456 = vmul.f32 %v427, %v445
    %v457 = vmul.f32 %v430, %v449
    %458 = vst [vmem:[#allocation3 + $0x100] sm:$0xff] %v454
    %459 = vst [vmem:[#allocation3 + $0x108] sm:$0xff] %v455
    %460 = vst [vmem:[#allocation3 + $0x110] sm:$0xff] %v456
    %461 = vst [vmem:[#allocation3 + $0x118] sm:$0xff] %v457
    %v462 = vld [vmem:[%s1] sm:$0xff]
    %v463 = vld [vmem:[#allocation3] sm:$0xff]
    %v464 = vld [vmem:[#allocation3 + $0x8] sm:$0xff]
    %v465 = vld [vmem:[#allocation3 + $0x10] sm:$0xff]
    %v466 = vld [vmem:[#allocation3 + $0x18] sm:$0xff]
    %v467 = vld [vmem:[#allocation3 + $0x20] sm:$0xff]
    %v468 = vld [vmem:[#allocation3 + $0x28] sm:$0xff]
    %v469 = vld [vmem:[#allocation3 + $0x30] sm:$0xff]
    %v470 = vld [vmem:[#allocation3 + $0x38] sm:$0xff]
    %v471 = vld [vmem:[#allocation3 + $0x40] sm:$0xff]
    %v472 = vld [vmem:[#allocation3 + $0x48] sm:$0xff]
    %v473 = vld [vmem:[#allocation3 + $0x50] sm:$0xff]
    %v474 = vld [vmem:[#allocation3 + $0x58] sm:$0xff]
    %v475 = vld [vmem:[#allocation3 + $0x60] sm:$0xff]
    %v476 = vld [vmem:[#allocation3 + $0x68] sm:$0xff]
    %v477 = vld [vmem:[#allocation3 + $0x70] sm:$0xff]
    %v478 = vld [vmem:[#allocation3 + $0x78] sm:$0xff]
    %v479 = vld [vmem:[#allocation3 + $0x80] sm:$0xff]
    %v480 = vld [vmem:[#allocation3 + $0x88] sm:$0xff]
    %v481 = vld [vmem:[#allocation3 + $0x90] sm:$0xff]
    %v482 = vld [vmem:[#allocation3 + $0x98] sm:$0xff]
    %v483 = vld [vmem:[#allocation3 + $0xa0] sm:$0xff]
    %v484 = vld [vmem:[#allocation3 + $0xa8] sm:$0xff]
    %v485 = vld [vmem:[#allocation3 + $0xb0] sm:$0xff]
    %v486 = vld [vmem:[#allocation3 + $0xb8] sm:$0xff]
    %v487 = vld [vmem:[#allocation3 + $0xc0] sm:$0xff]
    %v488 = vld [vmem:[#allocation3 + $0xc8] sm:$0xff]
    %v489 = vld [vmem:[#allocation3 + $0xd0] sm:$0xff]
    %v490 = vld [vmem:[#allocation3 + $0xd8] sm:$0xff]
    %v491 = vld [vmem:[#allocation3 + $0xe0] sm:$0xff]
    %v492 = vld [vmem:[#allocation3 + $0xe8] sm:$0xff]
    %v493 = vld [vmem:[#allocation3 + $0xf0] sm:$0xff]
    %v494 = vld [vmem:[#allocation3 + $0xf8] sm:$0xff]
    %v495 = vld [vmem:[#allocation3 + $0x100] sm:$0xff]
    %v496 = vld [vmem:[#allocation3 + $0x108] sm:$0xff]
    %v497 = vld [vmem:[#allocation3 + $0x110] sm:$0xff]
    %v498 = vld [vmem:[#allocation3 + $0x118] sm:$0xff]
    %v499 = vld [vmem:[%s2] sm:$0xff]
    %501 = vset.pattern.permute.xlu0 0
    %502 = vperm.xlu0 %501, %v499
    %v503 = vpop.permute.xlu0 %502
    %vm505 = vcmask 588800
    %v507 = vsel %vm505, %v462, 0
    %509 = vmatprep.subr.mxu0 %v464
    %510 = vmatpush1.msra.mxu0 %v463
    %511 = vmatprep.subr.mxu0 %v468
    %512 = vmatpush1.msra.mxu0 %v467
    %513 = vmatprep.subr.mxu0 %v472
    %514 = vmatpush1.msra.mxu0 %v471
    %515 = vmatprep.subr.mxu0 %v476
    %516 = vmatpush1.msra.mxu0 %v475
    %517 = vmatprep.subr.mxu0 %v480
    %518 = vmatpush1.msra.mxu0 %v479
    %519 = vmatprep.subr.mxu0 %v484
    %520 = vmatpush1.msra.mxu0 %v483
    %521 = vmatprep.subr.mxu0 %v488
    %522 = vmatpush1.msra.mxu0 %v487
    %523 = vmatprep.subr.mxu0 %v492
    %524 = vmatpush1.msra.mxu0 %v491
    %525 = vmatprep.subr.mxu0 %v496
    %526 = vmatpush1.msra.mxu0 %v495
    %527 = vmatprep.subr.mxu0 0.0
    %528 = vmatpush1.msra.mxu0 0.0
    %529 = vmatprep.subr.mxu0 0.0
    %530 = vmatpush1.msra.mxu0 0.0
    %531 = vmatprep.subr.mxu0 0.0
    %532 = vmatpush1.msra.mxu0 0.0
    %533 = vmatprep.subr.mxu0 0.0
    %534 = vmatpush1.msra.mxu0 0.0
    %535 = vmatprep.subr.mxu0 0.0
    %536 = vmatpush1.msra.mxu0 0.0
    %537 = vmatprep.subr.mxu0 0.0
    %538 = vmatpush1.msra.mxu0 0.0
    %539 = vmatprep.subr.mxu0 0.0
    %540 = vmatpush1.msra.mxu0 0.0
    %541 = vmatprep.subr.mxu0 0.0
    %542 = vmatpush1.msra.mxu0 0.0
    %543 = vmatprep.subr.mxu0 0.0
    %544 = vmatpush1.msra.mxu0 0.0
    %545 = vmatprep.subr.mxu0 0.0
    %546 = vmatpush1.msra.mxu0 0.0
    %547 = vmatprep.subr.mxu0 0.0
    %548 = vmatpush1.msra.mxu0 0.0
    %549 = vmatprep.subr.mxu0 0.0
    %550 = vmatpush1.msra.mxu0 0.0
    %551 = vmatprep.subr.mxu0 0.0
    %552 = vmatpush1.msra.mxu0 0.0
    %553 = vmatprep.subr.mxu0 0.0
    %554 = vmatpush1.msra.mxu0 0.0
    %555 = vmatprep.subr.mxu0 0.0
    %556 = vmatpush1.msra.mxu0 0.0
    %557 = vmatprep.subr.mxu0 0.0
    %558 = vmatpush1.msra.mxu0 0.0
    %559 = vmatprep.subr.mxu0 0.0
    %560 = vmatpush1.msra.mxu0 0.0
    %561 = vmatprep.subr.mxu0 0.0
    %562 = vmatpush1.msra.mxu0 0.0
    %563 = vmatprep.subr.mxu0 0.0
    %564 = vmatpush1.msra.mxu0 0.0
    %565 = vmatprep.subr.mxu0 0.0
    %566 = vmatpush1.msra.mxu0 0.0
    %567 = vmatprep.subr.mxu0 0.0
    %568 = vmatpush1.msra.mxu0 0.0
    %569 = vmatprep.subr.mxu0 0.0
    %570 = vmatpush1.msra.mxu0 0.0
    %571 = vmatprep.subr.mxu0 0.0
    %572 = vmatpush1.msra.mxu0 0.0
    %573 = vmatprep.mubr.f32.mxu0 0.0
    %574 = vmatmul.mubr.f32.gmra.mrb[0].mxu0 %v507
    %v575 = vpop.f32.mrb[0].mxu0
    %v576 = vadd.f32 %v503, %v575
    %v577 = vpop.f32.mrb[0].mxu0
    %v578 = vadd.f32 %v503, %v577
    %579 = vdwg.mxu0
    %580 = vmatprep.subr.mxu0 %v466
    %581 = vmatpush1.msra.mxu0 %v465
    %582 = vmatprep.subr.mxu0 %v470
    %583 = vmatpush1.msra.mxu0 %v469
    %584 = vmatprep.subr.mxu0 %v474
    %585 = vmatpush1.msra.mxu0 %v473
    %586 = vmatprep.subr.mxu0 %v478
    %587 = vmatpush1.msra.mxu0 %v477
    %588 = vmatprep.subr.mxu0 %v482
    %589 = vmatpush1.msra.mxu0 %v481
    %590 = vmatprep.subr.mxu0 %v486
    %591 = vmatpush1.msra.mxu0 %v485
    %592 = vmatprep.subr.mxu0 %v490
    %593 = vmatpush1.msra.mxu0 %v489
    %594 = vmatprep.subr.mxu0 %v494
    %595 = vmatpush1.msra.mxu0 %v493
    %596 = vmatprep.subr.mxu0 %v498
    %597 = vmatpush1.msra.mxu0 %v497
    %598 = vmatprep.subr.mxu0 0.0
    %599 = vmatpush1.msra.mxu0 0.0
    %600 = vmatprep.subr.mxu0 0.0
    %601 = vmatpush1.msra.mxu0 0.0
    %602 = vmatprep.subr.mxu0 0.0
    %603 = vmatpush1.msra.mxu0 0.0
    %604 = vmatprep.subr.mxu0 0.0
    %605 = vmatpush1.msra.mxu0 0.0
    %606 = vmatprep.subr.mxu0 0.0
    %607 = vmatpush1.msra.mxu0 0.0
    %608 = vmatprep.subr.mxu0 0.0
    %609 = vmatpush1.msra.mxu0 0.0
    %610 = vmatprep.subr.mxu0 0.0
    %611 = vmatpush1.msra.mxu0 0.0
    %612 = vmatprep.subr.mxu0 0.0
    %613 = vmatpush1.msra.mxu0 0.0
    %614 = vmatprep.subr.mxu0 0.0
    %615 = vmatpush1.msra.mxu0 0.0
    %616 = vmatprep.subr.mxu0 0.0
    %617 = vmatpush1.msra.mxu0 0.0
    %618 = vmatprep.subr.mxu0 0.0
    %619 = vmatpush1.msra.mxu0 0.0
    %620 = vmatprep.subr.mxu0 0.0
    %621 = vmatpush1.msra.mxu0 0.0
    %622 = vmatprep.subr.mxu0 0.0
    %623 = vmatpush1.msra.mxu0 0.0
    %624 = vmatprep.subr.mxu0 0.0
    %625 = vmatpush1.msra.mxu0 0.0
    %626 = vmatprep.subr.mxu0 0.0
    %627 = vmatpush1.msra.mxu0 0.0
    %628 = vmatprep.subr.mxu0 0.0
    %629 = vmatpush1.msra.mxu0 0.0
    %630 = vmatprep.subr.mxu0 0.0
    %631 = vmatpush1.msra.mxu0 0.0
    %632 = vmatprep.subr.mxu0 0.0
    %633 = vmatpush1.msra.mxu0 0.0
    %634 = vmatprep.subr.mxu0 0.0
    %635 = vmatpush1.msra.mxu0 0.0
    %636 = vmatprep.subr.mxu0 0.0
    %637 = vmatpush1.msra.mxu0 0.0
    %638 = vmatprep.subr.mxu0 0.0
    %639 = vmatpush1.msra.mxu0 0.0
    %640 = vmatprep.subr.mxu0 0.0
    %641 = vmatpush1.msra.mxu0 0.0
    %642 = vmatprep.subr.mxu0 0.0
    %643 = vmatpush1.msra.mxu0 0.0
    %644 = vmatprep.mubr.f32.mxu0 0.0
    %645 = vmatmul.mubr.f32.gmra.mrb[0].mxu0 %v507
    %v646 = vpop.f32.mrb[0].mxu0
    %v647 = vadd.f32 %v503, %v646
    %v648 = vpop.f32.mrb[0].mxu0
    %v649 = vadd.f32 %v503, %v648
    %650 = vdwg.mxu0
    %v651 = vmax.f32 %v576, 0.0
    %v652 = vmax.f32 %v578, 0.0
    %v653 = vmax.f32 %v647, 0.0
    %v654 = vmax.f32 %v649, 0.0
    %v657 = vrot.slane %v651, 4
    %v658 = vrot.slane %v652, 4
    %661 = vst [vmem:[%s4] sm:$0xf0] %v657
    %662 = vst [vmem:[%s4 + $0x8] sm:$0xf0] %v658
    %663 = vst [vmem:[%s4 + $0x10] sm:$0xf] %v657
    %664 = vst [vmem:[%s4 + $0x18] sm:$0xf] %v658
    %v667 = vrot.slane %v653, 4
    %v668 = vrot.slane %v654, 4
    %s671 = scalar_lea.vmem %s4, 32
    %672 = vst [vmem:[%s671] sm:$0xf0] %v667
    %673 = vst [vmem:[%s671 + $0x8] sm:$0xf0] %v668
    %674 = vst [vmem:[%s671 + $0x10] sm:$0xf] %v667
    %675 = vst [vmem:[%s671 + $0x18] sm:$0xf] %v668
    // Predicated region
    $region26: #{tpu_custom_call.1} parent=1 // pred_check
      _
    $region27: #{tpu_custom_call.1} parent=1 // pred_check_branch
      %677 = sbr.rel (0) target = $region29
    $region28: #{tpu_custom_call.1} parent=1 // pred_region
      _
    $region29: #{tpu_custom_call.1} parent=1 // pred_fallthru
      _
    // Predicated region
    $region30: #{tpu_custom_call.1} parent=1 // pred_check
      _
    $region31: #{tpu_custom_call.1} parent=1 // pred_check_branch
      %679 = sbr.rel (0) target = $region33
    $region32: #{tpu_custom_call.1} parent=1 // pred_region
      _
    $region33: #{tpu_custom_call.1} parent=1 // pred_fallthru
      _
    %680 = vsyncpa [#allocation5], 1
    %681 = vsyncpa [#allocation7], 1

</llo_original>
